<compile_context>
chip_gen: v7x
topology: tpu7x:2x2x1
jax: 0.10.0
libtpu: 0.0.40
codegen_flags: <defaults>
</compile_context>

<pallas_src>
import jax
import jax.numpy as jnp
from jax.experimental import pallas as pl
from jax.experimental.pallas import tpu as pltpu


def _copy_kernel(x_ref, o_ref):
    # x_ref: (tb, H) — only the t=0 rows of this batch tile were DMA'd.
    # o_ref: (tb, H). Pure copy; no compute.
    o_ref[...] = x_ref[...]


def _slice_t0_kernel(x_ref, o_ref):
    # x_ref: (tb, T, H) — full contiguous slab (small-H fallback).
    # o_ref: (tb, H).
    o_ref[...] = x_ref[...][:, 0, :]


def _device_params():
    """Per-generation block-size target (bytes) and whether this is a 2-TC chip."""
    kind = ""
    try:
        kind = jax.devices()[0].device_kind.lower()
    except Exception:  # pragma: no cover - defensive; fall back to a safe default
        pass
    if "7" in kind:          # v7x: 3.2 TB/s HBM -> bigger tiles pay off
        return 8 * 1024 * 1024, True
    if "v6" in kind:         # v6e: 32 MiB scoped default, 1.4 TB/s
        return 4 * 1024 * 1024, False
    if "v5" in kind:         # v5e: 16 MiB scoped default (we raise it anyway)
        return 3 * 1024 * 1024, False
    return 4 * 1024 * 1024, False


def _choose_batch_tile(batch: int, row_bytes: int, target_bytes: int, sublane: int) -> int:
    """Batch-tile size: ~target_bytes per input block, rounded to `sublane` rows."""
    rows = max(sublane, target_bytes // max(1, row_bytes))
    rows = (rows // sublane) * sublane
    if rows >= batch:
        return batch  # single full-batch block (block dim == array dim)
    return rows


def last_step(inputs: jax.Array) -> jax.Array:
    """Pallas TPU equivalent of LAST_STEP.forward: returns inputs[:, 0, :]."""
    B, T, H = inputs.shape
    itemsize = inputs.dtype.itemsize
    target_bytes, is_two_core = _device_params()

    # Dtype-aware sublane rounding: f32 -> 8, bf16/f16 -> 16, int8/fp8 -> 32.
    sublane = max(8, 32 // max(1, itemsize))

    # Small-H fallback: per-row strided DMA of < ~512 B is descriptor-limited;
    # with small T it is cheaper to read the full contiguous (tb, T, H) slab
    # and slice t=0 in-kernel.
    # TODO(synk): for H < 128 in isolation, a plain XLA slice (no Pallas) is
    # already optimal; keep this kernel only if it fuses with adjacent work.
    contiguous = (H * itemsize < 512) and (T <= 16)

    row_bytes = (T * H if contiguous else H) * itemsize
    tb = _choose_batch_tile(B, row_bytes, target_bytes, sublane)
    num_blocks = pl.cdiv(B, tb)
    grid = (num_blocks,)

    # ---- Block specs -------------------------------------------------------
    out_spec = pl.BlockSpec((tb, H), lambda i: (i, 0))
    deep_pipeline = False
    if contiguous:
        in_spec = pl.BlockSpec((tb, T, H), lambda i: (i, 0, 0))
        kernel = _slice_t0_kernel
    else:
        kernel = _copy_kernel
        # Strided per-row DMA: a third buffer hides issue latency when there
        # are enough grid steps for it to matter.
        deep_pipeline = num_blocks > 2
        if deep_pipeline:
            try:
                in_spec = pl.BlockSpec((tb, None, H), lambda i: (i, 0, 0),
                                       pipeline_mode=pl.Buffered(3))
            except TypeError:  # older API without pipeline_mode
                in_spec = pl.BlockSpec((tb, None, H), lambda i: (i, 0, 0))
                deep_pipeline = False
        else:
            in_spec = pl.BlockSpec((tb, None, H), lambda i: (i, 0, 0))

    # ---- Compiler params: VMEM budget + core parallelism -------------------
    in_blk_bytes = tb * (T * H if contiguous else H) * itemsize
    out_blk_bytes = tb * H * itemsize
    in_bufs = 3 if deep_pipeline else 2
    needed = in_bufs * in_blk_bytes + 2 * out_blk_bytes + (2 << 20)
    vmem_limit = int(min(max(needed, 32 << 20), 48 << 20))

    if is_two_core and num_blocks >= 2:
        # v7x: force the batch axis to split across both TensorCores.
        dim_sem = (getattr(pltpu, "CORE_PARALLEL", pltpu.PARALLEL),)
    else:
        dim_sem = (pltpu.PARALLEL,)

    # True byte traffic (not the full B*T*H input footprint) so XLA schedules
    # surrounding ops correctly.
    bytes_accessed = B * (T * H if contiguous else H) * itemsize + B * H * itemsize
    cost = pl.CostEstimate(flops=0, transcendentals=0, bytes_accessed=bytes_accessed)

    return pl.pallas_call(
        kernel,
        out_shape=jax.ShapeDtypeStruct((B, H), inputs.dtype),
        grid=grid,
        in_specs=[in_spec],
        out_specs=out_spec,
        compiler_params=pltpu.CompilerParams(
            dimension_semantics=dim_sem,
            vmem_limit_bytes=vmem_limit,
        ),
        cost_estimate=cost,
    )(inputs)


if __name__ == "__main__":
    key = jax.random.PRNGKey(0)

    # Shape implied by the module: (batch, seq, hidden). Small H exercises the
    # contiguous-slab fallback path.
    B, T, H = 2, 8, 32
    x = jax.random.normal(key, (B, T, H), dtype=jnp.float32)
    out = last_step(x)
    jax.block_until_ready(out)
    ref = x[:, 0, :]  # torch.squeeze(inputs[:, 0:1, :], dim=1)
    assert out.shape == (B, H), out.shape
    assert jnp.allclose(out, ref), "mismatch vs reference slice (fallback path)"

    # Also exercise the strided (time-axis squeezed) path with a wider hidden.
    B2, T2, H2 = 16, 4, 256
    x2 = jax.random.normal(jax.random.PRNGKey(0), (B2, T2, H2), dtype=jnp.float32)
    out2 = last_step(x2)
    jax.block_until_ready(out2)
    assert out2.shape == (B2, H2), out2.shape
    assert jnp.allclose(out2, x2[:, 0, :]), "mismatch vs reference slice (strided path)"

    print("KERNEL_OK")
</pallas_src>

<mosaic_0001>
module attributes {stable_mosaic.version = 11 : i64} {
  func.func @_slice_t0_kernel(%arg0: i32, %arg1: memref<2x8x32xf32, #tpu.memory_space<vmem>>, %arg2: memref<2x32xf32, #tpu.memory_space<vmem>>) attributes {dimension_semantics = [#tpu.dimension_semantics<parallel>], iteration_bounds = array<i64: 1>, scalar_prefetch = 0 : i64, scratch_operands = 0 : i64, tpu.core_type = #tpu.core_type<tc>, window_params = [{transform_indices = @transform_0, window_bounds = array<i64: 2, 8, 32>}, {transform_indices = @transform_1, window_bounds = array<i64: 2, 32>}]} {
    %c0 = arith.constant 0 : index
    %c0_0 = arith.constant 0 : index
    %c0_1 = arith.constant 0 : index
    %0 = vector.load %arg1[%c0, %c0_0, %c0_1] : memref<2x8x32xf32, #tpu.memory_space<vmem>>, vector<2x8x32xf32>
    %1 = vector.extract_strided_slice %0 {offsets = [0, 0, 0], sizes = [2, 1, 32], strides = [1, 1, 1]} : vector<2x8x32xf32> to vector<2x1x32xf32>
    %2 = vector.shape_cast %1 : vector<2x1x32xf32> to vector<2x32xf32>
    %c0_2 = arith.constant 0 : index
    %c0_3 = arith.constant 0 : index
    %3 = vector.load %arg2[%c0_2, %c0_3] : memref<2x32xf32, #tpu.memory_space<vmem>>, vector<2x32xf32>
    tpu.vector_store %arg2[%c0_2, %c0_3], %2 {strides = array<i32>} : memref<2x32xf32, #tpu.memory_space<vmem>>, vector<2x32xf32>,
    return
  }
  func.func @transform_0(%arg0: i32) -> (i32, i32, i32) {
    %c0_i32 = arith.constant 0 : i32
    %c0_i32_0 = arith.constant 0 : i32
    %c0_i32_1 = arith.constant 0 : i32
    return %arg0, %c0_i32, %c0_i32_0 : i32, i32, i32
  }
  func.func @transform_1(%arg0: i32) -> (i32, i32) {
    %c0_i32 = arith.constant 0 : i32
    %c0_i32_0 = arith.constant 0 : i32
    return %arg0, %c0_i32 : i32, i32
  }
}

</mosaic_0001>

<llo_original>
// kernel: tpu_custom_call.1
$region0: #{tpu_custom_call.1}
  #allocation0 [shape = 'u32[]', space=smem, size = 0x4, offset = 0x4, fixed_abs, tag = 'smem constant byte address 0x4 - core index']
  #allocation1 [shape = 'u32[144,128]{1,0:T(1,128)}', space=vmem, size = 0x12000, scoped, tag = 'internal scratch']
  %s0 = inlined_call_operand.hbm [shape: f32[2,8,32], index: 0, kind: input, shape index: {}]
  %s1 = inlined_call_operand.hbm [shape: f32[2,32], index: 1, kind: output, shape index: {}]
  %s2 = sld [smem:[#allocation0]]
  $region18: #{tpu_custom_call.1} parent=0
    _
  %s4 = ssub.s32 1, %s2
  %s5 = scalar_select 0, %s4, %s2
  $region1: #{tpu_custom_call.1} parent=0
    #allocation2 [shape = 'u8[8192]{0}', space=vmem, size = 0x2000, scoped, tag = 'input window, operand 0, single buffered']
    #allocation3 [shape = 's32[1]{0}', space=sflag, size = 0x4, scoped, tag = 'scoped memory for tpu_custom_call.1']
    #allocation4 [shape = 's32[1]{0}', space=sflag, size = 0x4, scoped, tag = 'scoped memory for tpu_custom_call.1']
    #allocation5 [shape = 'u8[1024]{0}', space=vmem, size = 0x400, scoped, tag = 'output window, operand 0, single buffered']
    %6 = vsyncpa [#allocation3], 0
    %7 = vsyncpa [#allocation4], 0
    // Predicated region
    $region2: #{tpu_custom_call.1} parent=1 // pred_check
      _
    $region3: #{tpu_custom_call.1} parent=1 // pred_check_branch
      %9 = sbr.rel (0) target = $region5
    $region4: #{tpu_custom_call.1} parent=1 // pred_region
      %s11 = ssub.s32 256, 256
      %12 = vsyncadd [#allocation3], %s11
      %s13 = sshll.u32 [#allocation2], 4
      %s14 = int_to_ptr.vmem [resolvable:$true] %s13
      %19 = dma.hbm_to_vmem [thread:$0]  %s0, 256, %s14, [#allocation3], 128, 128, 8
    $region5: #{tpu_custom_call.1} parent=1 // pred_fallthru
      _
    // Predicated region
    $region6: #{tpu_custom_call.1} parent=1 // pred_check
      _
    $region7: #{tpu_custom_call.1} parent=1 // pred_check_branch
      %21 = sbr.rel (0) target = $region9
    $region8: #{tpu_custom_call.1} parent=1 // pred_region
      %22 = dma.done [#allocation3], 256
    $region9: #{tpu_custom_call.1} parent=1 // pred_fallthru
      _
    %v23 = vld [vmem:[#allocation2] sm:$0xff]
    %v24 = vld [vmem:[#allocation2 + $0x8] sm:$0xff]
    %v27 = vrot.slane %v24, 7
    %vm28 = vcmask 1041409
    %v29 = vsel %vm28, %v27, %v23
    %vm31 = vcmask 254976
    %32 = vst.msk [vmem:[#allocation5] sm:$0x3] %vm31, %v29
    // Predicated region
    $region10: #{tpu_custom_call.1} parent=1 // pred_check
      _
    $region11: #{tpu_custom_call.1} parent=1 // pred_check_branch
      %34 = sbr.rel (0) target = $region13
    $region12: #{tpu_custom_call.1} parent=1 // pred_region
      %s36 = ssub.s32 32, 32
      %37 = vsyncadd [#allocation4], %s36
      %s39 = sshll.u32 [#allocation5], 4
      %s40 = int_to_ptr.vmem [resolvable:$true] %s39
      %42 = dma.vmem_to_hbm [thread:$0]  %s40, 32, %s1, [#allocation4]
    $region13: #{tpu_custom_call.1} parent=1 // pred_fallthru
      _
    // Predicated region
    $region14: #{tpu_custom_call.1} parent=1 // pred_check
      _
    $region15: #{tpu_custom_call.1} parent=1 // pred_check_branch
      %44 = sbr.rel (0) target = $region17
    $region16: #{tpu_custom_call.1} parent=1 // pred_region
      %45 = dma.done [#allocation4], 32
    $region17: #{tpu_custom_call.1} parent=1 // pred_fallthru
      _
    %46 = vsyncpa [#allocation3], 1
    %47 = vsyncpa [#allocation4], 1

</llo_original>
